<compile_context>
chip_gen: v7x
topology: tpu7x:2x2x1
jax: 0.10.0
libtpu: 0.0.40
codegen_flags: <defaults>
</compile_context>

<pallas_src>
import functools

import jax
import jax.numpy as jnp
from jax.experimental import pallas as pl
from jax.experimental.pallas import tpu as pltpu


# ----------------------------------------------------------------------------
# Scoped-VMEM budget: ~3/4 of physical (v5e/v6e 128 MiB -> 96 MiB, v7x 64 -> 48).
# ----------------------------------------------------------------------------
def _vmem_limit_bytes():
    try:
        cap = pltpu.get_tpu_info().vmem_capacity_bytes
        return int(min(100 * 1024 * 1024, (cap * 3) // 4))
    except Exception:
        return 48 * 1024 * 1024


_VMEM_LIMIT = _vmem_limit_bytes()


def _choose_tile(n):
    # 256 matches the v6e/v7x MXU and halves grid-step overhead; keep 128 for small
    # graphs so the dst-tile axis still has >= 2 tiles (v7x 2-TC balance).
    return 256 if n >= 512 else 128


# ----------------------------------------------------------------------------
# Embedding kernel:  h_T (hidden, N) = emb_w^T @ h0_T + b      (lane-dense output)
# ----------------------------------------------------------------------------
def _embed_kernel(xt_ref, w_ref, b_ref, o_ref):
    y = jax.lax.dot_general(
        w_ref[...], xt_ref[...],                      # (in,hid)^T @ (in,tn)
        dimension_numbers=(((0,), (0,)), ((), ())),
        preferred_element_type=jnp.float32)           # (hidden, tn)
    o_ref[...] = y + b_ref[...]


def embed_transposed(h0, w, b, tn):
    npad, in_dim = h0.shape
    hidden = w.shape[1]
    h0_t = jnp.transpose(h0).astype(jnp.bfloat16)     # (in_dim, Np): tiny one-time transpose
    return pl.pallas_call(
        _embed_kernel,
        grid=(npad // tn,),
        in_specs=[pl.BlockSpec((in_dim, tn), lambda r: (0, r)),
                  pl.BlockSpec((in_dim, hidden), lambda r: (0, 0)),
                  pl.BlockSpec((hidden, 1), lambda r: (0, 0))],
        out_specs=pl.BlockSpec((hidden, tn), lambda r: (0, r)),
        out_shape=jax.ShapeDtypeStruct((hidden, npad), jnp.float32),
        compiler_params=pltpu.CompilerParams(
            dimension_semantics=("parallel",),
            vmem_limit_bytes=_VMEM_LIMIT),
    )(h0_t, w.astype(jnp.bfloat16), b.reshape(-1, 1).astype(jnp.float32))


# ----------------------------------------------------------------------------
# GMMConv fc projection, K-major bf16 output produced directly by the kernel:
#   hk[k, i, :] = h[i, :] @ fc_w[:, k*dout:(k+1)*dout]
# ----------------------------------------------------------------------------
def _fc_proj_kernel(ht_ref, w_ref, o_ref):
    x = ht_ref[...].astype(jnp.bfloat16)              # (din, tn)
    y = jax.lax.dot_general(
        x, w_ref[0],                                  # contract din
        dimension_numbers=(((0,), (0,)), ((), ())),
        preferred_element_type=jnp.float32)           # (tn, dout)
    o_ref[0] = y.astype(jnp.bfloat16)


def fc_project_kmajor(h_t, fc_w, n_kernel, dout, tn):
    din, npad = h_t.shape
    # (din, K*dout) -> (K, din, dout): tiny weight relayout, done once per layer call.
    w_km = jnp.transpose(fc_w.reshape(din, n_kernel, dout), (1, 0, 2)).astype(jnp.bfloat16)
    return pl.pallas_call(
        _fc_proj_kernel,
        grid=(n_kernel, npad // tn),
        in_specs=[pl.BlockSpec((din, tn), lambda k, r: (0, r)),
                  pl.BlockSpec((1, din, dout), lambda k, r: (k, 0, 0))],
        out_specs=pl.BlockSpec((1, tn, dout), lambda k, r: (k, r, 0)),
        out_shape=jax.ShapeDtypeStruct((n_kernel, npad, dout), jnp.bfloat16),
        compiler_params=pltpu.CompilerParams(
            dimension_semantics=("parallel", "parallel"),
            vmem_limit_bytes=_VMEM_LIMIT),
    )(h_t, w_km)


# ----------------------------------------------------------------------------
# GMM (MoNet) aggregation kernel, gridded over (dst tile j, compacted src slot l).
#   pseudo(i->j) = [1/sqrt(deg_i+1), 1/sqrt(deg_j+1)]
#   u_d(i,j)     = tanh(pp_w[0,d]*s_i + pp_w[1,d]*s_j + pp_b[d])
#   w_k(i,j)     = adj(i,j) * exp(-0.5 * sum_d (u_d - mu[k,d])^2 * inv_sigma[k,d]^2)
#   agg[:,j]     = sum_k sum_i hk[k,i,:] * w_k(i,j)     (ONE fused MXU contraction)
#   out[:,j]     = (residual? h[:,j] : 0) + relu(BN(agg[:,j] + bias))   (eval BN,
#                  dropout identity; residual after ReLU as in GMMLayer)
# ----------------------------------------------------------------------------
def _gmm_agg_kernel(si_ref, nnz_ref, adj_ref, hk_ref, hres_ref,
                    scol_ref, srow_ref, bnsc_ref, bnsh_ref, cb_ref,
                    ppw_ref, ppb_ref, mu_ref, isig2_ref,
                    o_ref, acc_ref, *, n_kernel, pdim, residual):
    j = pl.program_id(0)
    l = pl.program_id(1)

    @pl.when(l == 0)
    def _init():
        acc_ref[...] = jnp.zeros_like(acc_ref)

    # Only the first nnz[j] slots carry real (nonzero) src tiles; padded slots repeat
    # the previous block index (DMA elided by the pipeline) and skip all compute.
    @pl.when(l < nnz_ref[j])
    def _compute():
        s_i = scol_ref[...]                                       # (ti, 1) src scalar, f32
        s_j = srow_ref[...]                                       # (1, tj) dst scalar, f32
        adj = adj_ref[...]                                        # (ti, tj) bf16 0/1 mask

        # pseudo-coordinate projection (shared across kernels k); f32 VPU/EUP path.
        us = [jnp.tanh(s_i * ppw_ref[0, d] + s_j * ppw_ref[1, d] + ppb_ref[d])
              for d in range(pdim)]

        ws = []
        for k in range(n_kernel):
            diff0 = us[0] - mu_ref[k, 0]
            logit = diff0 * diff0 * isig2_ref[k, 0]
            for d in range(1, pdim):
                diff = us[d] - mu_ref[k, d]
                logit = logit + diff * diff * isig2_ref[k, d]
            ws.append(jnp.exp(-0.5 * logit).astype(jnp.bfloat16) * adj)   # (ti, tj) bf16

        w_cat = jnp.concatenate(ws, axis=0)                                 # (K*ti, tj)
        hk_cat = jnp.concatenate([hk_ref[k] for k in range(n_kernel)], axis=0)  # (K*ti, dout)
        # Single fused MXU contraction over (kernel, src) -> lane-dense (dout, tj).
        acc_ref[...] += jax.lax.dot_general(
            hk_cat, w_cat,
            dimension_numbers=(((0,), (0,)), ((), ())),
            preferred_element_type=jnp.float32)

    @pl.when(l == pl.num_programs(1) - 1)
    def _finalize():
        y = acc_ref[...] + cb_ref[...]                            # GMMConv bias
        y = y * bnsc_ref[...] + bnsh_ref[...]                     # eval-mode BatchNorm
        y = jnp.maximum(y, 0.0)                                   # ReLU
        if residual:
            y = hres_ref[...] + y                                 # residual after ReLU
        o_ref[...] = y.astype(o_ref.dtype)                        # dropout: eval -> identity


def gmm_layer(h_t, adj_bf16, s_col, s_row, src_idx, nnz, lp, residual, ti, tj):
    din, npad = h_t.shape
    n_kernel, pdim = lp['mu'].shape
    dout = lp['fc_w'].shape[1] // n_kernel
    res = bool(residual) and (din == dout)
    jt, it = npad // tj, npad // ti

    hk = fc_project_kmajor(h_t, lp['fc_w'], n_kernel, dout, tn=ti)    # (K, Np, dout) bf16
    isig2 = (lp['inv_sigma'] * lp['inv_sigma']).astype(jnp.float32)

    smem = pl.BlockSpec(memory_space=pltpu.MemorySpace.SMEM)
    grid_spec = pltpu.PrefetchScalarGridSpec(
        num_scalar_prefetch=2,                       # src_idx (jt,it), nnz (jt,) -> SMEM
        grid=(jt, it),                               # dst tiles (parallel), compacted src slots (reduction, last)
        in_specs=[
            pl.BlockSpec((ti, tj), lambda j, l, si, nz: (si[j, l], j)),                 # adj tile (bf16)
            pl.BlockSpec((n_kernel, ti, dout), lambda j, l, si, nz: (0, si[j, l], 0)),  # hk, src tile
            pl.BlockSpec((din, tj), lambda j, l, si, nz: (0, j)),                       # h_T for residual, dst tile
            pl.BlockSpec((ti, 1), lambda j, l, si, nz: (si[j, l], 0)),                  # src pseudo scalar
            pl.BlockSpec((1, tj), lambda j, l, si, nz: (0, j)),                         # dst pseudo scalar
            pl.BlockSpec((dout, 1), lambda j, l, si, nz: (0, 0)),                       # bn scale
            pl.BlockSpec((dout, 1), lambda j, l, si, nz: (0, 0)),                       # bn shift
            pl.BlockSpec((dout, 1), lambda j, l, si, nz: (0, 0)),                       # conv bias
            smem, smem, smem, smem,                                                     # pp_w, pp_b, mu, inv_sigma^2
        ],
        out_specs=pl.BlockSpec((dout, tj), lambda j, l, si, nz: (0, j)),
        scratch_shapes=[pltpu.VMEM((dout, tj), jnp.float32)],
    )
    return pl.pallas_call(
        functools.partial(_gmm_agg_kernel, n_kernel=n_kernel, pdim=pdim, residual=res),
        grid_spec=grid_spec,
        out_shape=jax.ShapeDtypeStruct((dout, npad), jnp.float32),
        compiler_params=pltpu.CompilerParams(
            dimension_semantics=("parallel", "arbitrary"),
            vmem_limit_bytes=_VMEM_LIMIT),
    )(src_idx, nnz, adj_bf16, hk, h_t, s_col, s_row,
      lp['bn_scale'].reshape(-1, 1), lp['bn_shift'].reshape(-1, 1), lp['conv_b'].reshape(-1, 1),
      lp['pp_w'], lp['pp_b'], lp['mu'], isig2)


# ----------------------------------------------------------------------------
# Fused mean-readout + MLPReadout: hg = memb @ h, then 3 chained linears in VMEM.
# ----------------------------------------------------------------------------
def _readout_kernel(memb_ref, ht_ref, w1_ref, b1_ref, w2_ref, b2_ref, w3_ref, b3_ref, o_ref):
    hg = jax.lax.dot_general(
        memb_ref[...], ht_ref[...],                   # (G,N) x (dout,N)^T -> (G,dout)
        dimension_numbers=(((1,), (1,)), ((), ())),
        preferred_element_type=jnp.float32)
    y = jnp.maximum(jnp.dot(hg, w1_ref[...], preferred_element_type=jnp.float32) + b1_ref[...], 0.0)
    y = jnp.maximum(jnp.dot(y, w2_ref[...], preferred_element_type=jnp.float32) + b2_ref[...], 0.0)
    o_ref[...] = jnp.dot(y, w3_ref[...], preferred_element_type=jnp.float32) + b3_ref[...]


def readout_mlp(memb, h_t, mlp):
    (w1, b1), (w2, b2), (w3, b3) = mlp
    g, n_classes = memb.shape[0], w3.shape[1]
    return pl.pallas_call(
        _readout_kernel,
        out_shape=jax.ShapeDtypeStruct((g, n_classes), jnp.float32),
        compiler_params=pltpu.CompilerParams(vmem_limit_bytes=_VMEM_LIMIT),
    )(memb, h_t, w1, b1.reshape(1, -1), w2, b2.reshape(1, -1), w3, b3.reshape(1, -1))


# ----------------------------------------------------------------------------
# Per-dst-tile compacted nonzero src-tile lists (block-diagonal batched graphs).
# Padded slots repeat the last valid tile id -> Pallas elides the repeated DMA.
# ----------------------------------------------------------------------------
def _compact_src_tiles(adj, ti, tj):
    n = adj.shape[0]
    it, jt = n // ti, n // tj
    blk = adj.reshape(it, ti, jt, tj)
    nz = (jnp.sum(jnp.abs(blk), axis=(1, 3)) > 0.0).T            # (jt, it)
    nnz = jnp.sum(nz, axis=1).astype(jnp.int32)                   # (jt,)
    order = jnp.argsort(jnp.logical_not(nz), axis=1).astype(jnp.int32)   # nonzero-first, stable
    ar = jnp.arange(it, dtype=jnp.int32)[None, :]
    last = jnp.take_along_axis(order, jnp.maximum(nnz - 1, 0)[:, None], axis=1)
    src_idx = jnp.where(ar < nnz[:, None], order, last)          # (jt, it)
    return src_idx, nnz


# ----------------------------------------------------------------------------
# Full MoNet forward (eval mode)
# ----------------------------------------------------------------------------
def monet_forward(params, h0, adj, memb):
    n = adj.shape[0]
    tile = _choose_tile(n)
    npad = ((n + tile - 1) // tile) * tile
    if npad != n:                                     # pad instead of whole-array fallback
        adj = jnp.zeros((npad, npad), adj.dtype).at[:n, :n].set(adj)
        h0 = jnp.zeros((npad, h0.shape[1]), h0.dtype).at[:n, :].set(h0)
        memb = jnp.zeros((memb.shape[0], npad), memb.dtype).at[:, :n].set(memb)

    # compute_pseudo: s[n] = 1 / sqrt(in_degree[n] + 1)   (glue, plain JAX)
    deg = jnp.sum(adj, axis=0)
    s = (1.0 / jnp.sqrt(deg + 1.0)).astype(jnp.float32)
    s_col = s.reshape(-1, 1)
    s_row = s.reshape(1, -1)

    adj_bf16 = adj.astype(jnp.bfloat16)               # exact 0/1 mask; halves the N^2 stream
    src_idx, nnz = _compact_src_tiles(adj, tile, tile)

    # embedding_h -> transposed (hidden, Np) node features
    h_t = embed_transposed(h0, params['emb_w'], params['emb_b'], tn=tile)

    # GMM layers (pseudo_proj fused into each aggregation kernel)
    for lp in params['gmm_layers']:
        h_t = gmm_layer(h_t, adj_bf16, s_col, s_row, src_idx, nnz, lp,
                        residual=params['residual'], ti=tile, tj=tile)

    # mean readout + MLPReadout, fused
    return readout_mlp(memb, h_t, params['mlp'])


# ----------------------------------------------------------------------------
# Deterministic parameter / input construction
# ----------------------------------------------------------------------------
def init_params(key, in_dim, hidden_dim, out_dim, n_kernel, pdim, n_classes, n_layers):
    keys = jax.random.split(key, 64)
    ki = iter(keys)

    def nrm(k, shape, scale):
        return scale * jax.random.normal(k, shape, jnp.float32)

    params = {'residual': True}
    params['emb_w'] = nrm(next(ki), (in_dim, hidden_dim), 0.1)
    params['emb_b'] = nrm(next(ki), (hidden_dim,), 0.1)

    dims = [(hidden_dim, hidden_dim)] * (n_layers - 1) + [(hidden_dim, out_dim)]
    bn_eps = 1e-5
    layers = []
    for (din, dout) in dims:
        layers.append({
            'fc_w': nrm(next(ki), (din, n_kernel * dout), 0.1),        # GMMConv fc (no bias)
            'conv_b': jnp.zeros((dout,), jnp.float32),                 # GMMConv bias (init zeros)
            'pp_w': nrm(next(ki), (2, pdim), 0.5),                     # pseudo_proj Linear(2, dim), W^T layout
            'pp_b': nrm(next(ki), (pdim,), 0.1),
            'mu': nrm(next(ki), (n_kernel, pdim), 0.1),                # init.normal_(mu, 0, 0.1)
            'inv_sigma': jnp.ones((n_kernel, pdim), jnp.float32),      # init.constant_(inv_sigma, 1)
            # eval-mode BN with fresh running stats (mean=0, var=1), gamma=1, beta=0
            'bn_scale': jnp.ones((dout,), jnp.float32) / jnp.sqrt(1.0 + bn_eps),
            'bn_shift': jnp.zeros((dout,), jnp.float32),
        })
    params['gmm_layers'] = layers

    # MLPReadout(out_dim, n_classes, L=2)
    mlp_dims = [(out_dim, out_dim // 2), (out_dim // 2, out_dim // 4), (out_dim // 4, n_classes)]
    params['mlp'] = [(nrm(next(ki), (a, b), 0.1), nrm(next(ki), (b,), 0.1)) for (a, b) in mlp_dims]
    return params


def make_graph(key, sizes):
    n = sum(sizes)
    adj = jnp.zeros((n, n), jnp.float32)
    memb = jnp.zeros((len(sizes), n), jnp.float32)
    off = 0
    for g, sz in enumerate(sizes):
        key, sub = jax.random.split(key)
        a = (jax.random.uniform(sub, (sz, sz)) < 0.35).astype(jnp.float32)
        a = jnp.maximum(a, a.T)                                  # undirected -> both directions
        a = a * (1.0 - jnp.eye(sz, dtype=jnp.float32))           # no self loops
        adj = adj.at[off:off + sz, off:off + sz].set(a)
        memb = memb.at[g, off:off + sz].set(1.0 / sz)            # mean readout
        off += sz
    return adj, memb


if __name__ == "__main__":
    # net_params (small, deterministic); N = 512 nodes -> 2x2 tile grid at tile=256
    # with two all-zero off-diagonal adjacency tiles exercising the DMA-elision path.
    in_dim, hidden_dim, out_dim = 16, 32, 32
    n_kernel, pdim, n_classes, n_layers = 3, 2, 6, 2
    graph_sizes = [128, 128, 128, 128]          # 4 graphs, 512 nodes total

    key = jax.random.PRNGKey(0)
    k_param, k_graph, k_feat = jax.random.split(key, 3)

    params = init_params(k_param, in_dim, hidden_dim, out_dim,
                         n_kernel, pdim, n_classes, n_layers)
    adj, memb = make_graph(k_graph, graph_sizes)
    h0 = jax.random.normal(k_feat, (sum(graph_sizes), in_dim), jnp.float32)

    out = monet_forward(params, h0, adj, memb)
    out = jax.block_until_ready(out)
    assert out.shape == (len(graph_sizes), n_classes)
    assert bool(jnp.all(jnp.isfinite(out)))
    print("KERNEL_OK")
</pallas_src>

<mosaic_0001>
module attributes {stable_mosaic.version = 11 : i64} {
  func.func @_embed_kernel(%arg0: i32, %arg1: memref<16x256xbf16, #tpu.memory_space<vmem>>, %arg2: memref<16x32xbf16, #tpu.memory_space<vmem>>, %arg3: memref<32x1xf32, #tpu.memory_space<vmem>>, %arg4: memref<32x256xf32, #tpu.memory_space<vmem>>) attributes {dimension_semantics = [#tpu.dimension_semantics<parallel>], iteration_bounds = array<i64: 2>, scalar_prefetch = 0 : i64, scratch_operands = 0 : i64, tpu.core_type = #tpu.core_type<tc>, window_params = [{transform_indices = @transform_0, window_bounds = array<i64: 16, 256>}, {pipeline_mode = #tpu.pipeline_mode<synchronous>, transform_indices = @transform_1, window_bounds = array<i64: 16, 32>}, {pipeline_mode = #tpu.pipeline_mode<synchronous>, transform_indices = @transform_2, window_bounds = array<i64: 32, 1>}, {transform_indices = @transform_3, window_bounds = array<i64: 32, 256>}]} {
    %c0 = arith.constant 0 : index
    %c0_0 = arith.constant 0 : index
    %0 = vector.load %arg2[%c0, %c0_0] : memref<16x32xbf16, #tpu.memory_space<vmem>>, vector<16x32xbf16>
    %c0_1 = arith.constant 0 : index
    %c0_2 = arith.constant 0 : index
    %1 = vector.load %arg1[%c0_1, %c0_2] : memref<16x256xbf16, #tpu.memory_space<vmem>>, vector<16x256xbf16>
    %cst = arith.constant dense<0.000000e+00> : vector<32x256xf32>
    %2 = tpu.matmul %0, %1, %cst {dimension_numbers = #tpu.dot_dimension_numbers<[0], [0], [1], [1], [0, 1, 1, 1], [], []>} : vector<16x32xbf16>, vector<16x256xbf16>, vector<32x256xf32> -> vector<32x256xf32>
    %c0_3 = arith.constant 0 : index
    %c0_4 = arith.constant 0 : index
    %3 = vector.load %arg3[%c0_3, %c0_4] : memref<32x1xf32, #tpu.memory_space<vmem>>, vector<32x1xf32>
    %4 = vector.broadcast %3 : vector<32x1xf32> to vector<32x256xf32>
    %5 = arith.addf %2, %4 : vector<32x256xf32>
    %c0_5 = arith.constant 0 : index
    %c0_6 = arith.constant 0 : index
    %6 = vector.load %arg4[%c0_5, %c0_6] : memref<32x256xf32, #tpu.memory_space<vmem>>, vector<32x256xf32>
    tpu.vector_store %arg4[%c0_5, %c0_6], %5 {strides = array<i32>} : memref<32x256xf32, #tpu.memory_space<vmem>>, vector<32x256xf32>,
    return
  }
  func.func @transform_0(%arg0: i32) -> (i32, i32) {
    %c0_i32 = arith.constant 0 : i32
    %c0_i32_0 = arith.constant 0 : i32
    return %c0_i32, %arg0 : i32, i32
  }
  func.func @transform_1(%arg0: i32) -> (i32, i32) {
    %c0_i32 = arith.constant 0 : i32
    %c0_i32_0 = arith.constant 0 : i32
    %c0_i32_1 = arith.constant 0 : i32
    return %c0_i32, %c0_i32_0 : i32, i32
  }
  func.func @transform_2(%arg0: i32) -> (i32, i32) {
    %c0_i32 = arith.constant 0 : i32
    %c0_i32_0 = arith.constant 0 : i32
    %c0_i32_1 = arith.constant 0 : i32
    return %c0_i32, %c0_i32_0 : i32, i32
  }
  func.func @transform_3(%arg0: i32) -> (i32, i32) {
    %c0_i32 = arith.constant 0 : i32
    %c0_i32_0 = arith.constant 0 : i32
    return %c0_i32, %arg0 : i32, i32
  }
}

</mosaic_0001>

<llo_original>
// kernel: tpu_custom_call.1
$region0: #{tpu_custom_call.1}
  #allocation0 [shape = 'u32[]', space=smem, size = 0x4, offset = 0x4, fixed_abs, tag = 'smem constant byte address 0x4 - core index']
  #allocation1 [shape = 'u32[144,128]{1,0:T(1,128)}', space=vmem, size = 0x12000, scoped, tag = 'internal scratch']
  %s0 = inlined_call_operand.vmem [shape: bf16[16,512], index: 0, kind: input, shape index: {}]
  %s1 = inlined_call_operand.hbm [shape: bf16[16,32], index: 1, kind: input, shape index: {}]
  %s2 = inlined_call_operand.vmem [shape: f32[32,1], index: 2, kind: input, shape index: {}]
  %s3 = inlined_call_operand.hbm [shape: f32[32,512], index: 3, kind: output, shape index: {}]
  %s4 = sld [smem:[#allocation0]]
  $region87: #{tpu_custom_call.1} parent=0
    _
  %s6 = ssub.s32 1, %s4
  %s7 = scalar_select 0, %s6, %s4
  $region1: #{tpu_custom_call.1} parent=0
    #allocation2 [shape = 'u8[16384]{0}', space=vmem, size = 0x4000, scoped, tag = 'input window, operand 0']
    #allocation3 [shape = 'u8[4096]{0}', space=vmem, size = 0x1000, scoped, tag = 'input window, operand 1, single buffered']
    #allocation4 [shape = 's32[2]{0}', space=sflag, size = 0x8, scoped, tag = 'scoped memory for tpu_custom_call.1']
    #allocation5 [shape = 's32[2]{0}', space=sflag, size = 0x8, scoped, tag = 'scoped memory for tpu_custom_call.1']
    #allocation6 [shape = 'u8[65536]{0}', space=vmem, size = 0x10000, scoped, tag = 'output window, operand 0']
    %8 = vsyncpa [#allocation4], 0
    %9 = vsyncpa [#allocation5], 0
    %s10 = scalar_lea.sflag [#allocation5], 1
    %11 = vsyncpa %s10, 0
    loop: start=0, step=1, limit=4
    $region2: #{tpu_custom_call.1} parent=1 // loop_pre_header
      _
    $region3: #{tpu_custom_call.1} parent=1 // loop_header
      %s13 = sphi 0, %s17
      %p14 = scmp.ge.s32.totalorder %s13, 4
      %s23 = sphi 0, %s25
      %s26 = sphi 0, %s23
      %s27 = sphi 0, %s26
      %s43 = sphi 0, %s27
      %s47 = sphi 0, %s47
      %s49 = sphi 0, %s47
      %s50 = sphi 0, %s49
      %s64 = sphi 0, %s50
      %s68 = sphi 0, %s68
      %s70 = sphi 0, %s68
      %s71 = sphi 0, %s70
      %s85 = sphi 0, %s71
      %s91 = sphi 0, %s93
      %s94 = sphi 0, %s91
      %s95 = sphi 0, %s94
      %s111 = sphi 0, %s95
    $region4: #{tpu_custom_call.1} parent=1 // loop_header_branch
      %16 = sbr.rel (%p14) target = $region8
    $region5: #{tpu_custom_call.1} parent=1 // loop_body
      %s18 = ssub.s32 %s13, 1
      %s19 = ssub.s32 %s13, 2
      %s20 = sadd.s32 %s13, 1
      %s21 = ssub.s32 %s13, %s20
      %p22 = scmp.eq.s32.totalorder %s21, 0
      %s24 = sadd.s32 %s23, 1
      %s25 = scalar_select %p22, %s23, %s24
      %p28 = pneg %p22
      %p29 = scmp.eq.s32.totalorder %s13, 1
      %p30 = por %p28, %p29
      %p31 = scmp.ne.s32.totalorder %s23, %s26
      %p32 = scmp.eq.s32.totalorder %s13, 0
      %p33 = por %p31, %p32
      %p34 = scmp.ne.s32.totalorder %s23, %s26
      %p35 = scmp.eq.s32.totalorder %s18, 1
      %p36 = por %p34, %p35
      %p37 = scmp.ne.s32.totalorder %s26, %s27
      %p38 = scmp.eq.s32.totalorder %s18, 0
      %p39 = por %p37, %p38
      %p40 = scmp.ne.s32.totalorder %s26, %s27
      %p41 = scmp.eq.s32.totalorder %s19, 1
      %p42 = por %p40, %p41
      %p44 = scmp.ne.s32.totalorder %s27, %s43
      %p45 = scmp.eq.s32.totalorder %s19, 0
      %p46 = por %p44, %p45
      %s48 = sadd.s32 %s47, 1
      %p51 = scmp.eq.s32.totalorder %s13, 1
      %p52 = scmp.ne.s32.totalorder %s47, %s49
      %p53 = scmp.eq.s32.totalorder %s13, 0
      %p54 = por %p52, %p53
      %p55 = scmp.ne.s32.totalorder %s47, %s49
      %p56 = scmp.eq.s32.totalorder %s18, 1
      %p57 = por %p55, %p56
      %p58 = scmp.ne.s32.totalorder %s49, %s50
      %p59 = scmp.eq.s32.totalorder %s18, 0
      %p60 = por %p58, %p59
      %p61 = scmp.ne.s32.totalorder %s49, %s50
      %p62 = scmp.eq.s32.totalorder %s19, 1
      %p63 = por %p61, %p62
      %p65 = scmp.ne.s32.totalorder %s50, %s64
      %p66 = scmp.eq.s32.totalorder %s19, 0
      %p67 = por %p65, %p66
      %s69 = sadd.s32 %s68, 1
      %p72 = scmp.eq.s32.totalorder %s13, 1
      %p73 = scmp.ne.s32.totalorder %s68, %s70
      %p74 = scmp.eq.s32.totalorder %s13, 0
      %p75 = por %p73, %p74
      %p76 = scmp.ne.s32.totalorder %s68, %s70
      %p77 = scmp.eq.s32.totalorder %s18, 1
      %p78 = por %p76, %p77
      %p79 = scmp.ne.s32.totalorder %s70, %s71
      %p80 = scmp.eq.s32.totalorder %s18, 0
      %p81 = por %p79, %p80
      %p82 = scmp.ne.s32.totalorder %s70, %s71
      %p83 = scmp.eq.s32.totalorder %s19, 1
      %p84 = por %p82, %p83
      %p86 = scmp.ne.s32.totalorder %s71, %s85
      %p87 = scmp.eq.s32.totalorder %s19, 0
      %p88 = por %p86, %p87
      %s89 = ssub.s32 %s13, %s20
      %p90 = scmp.eq.s32.totalorder %s89, 0
      %s92 = sadd.s32 %s91, 1
      %s93 = scalar_select %p90, %s91, %s92
      %p96 = pneg %p90
      %p97 = scmp.eq.s32.totalorder %s13, 1
      %p98 = por %p96, %p97
      %p99 = scmp.ne.s32.totalorder %s91, %s94
      %p100 = scmp.eq.s32.totalorder %s13, 0
      %p101 = por %p99, %p100
      %p102 = scmp.ne.s32.totalorder %s91, %s94
      %p103 = scmp.eq.s32.totalorder %s18, 1
      %p104 = por %p102, %p103
      %p105 = scmp.ne.s32.totalorder %s94, %s95
      %p106 = scmp.eq.s32.totalorder %s18, 0
      %p107 = por %p105, %p106
      %p108 = scmp.ne.s32.totalorder %s94, %s95
      %p109 = scmp.eq.s32.totalorder %s19, 1
      %p110 = por %p108, %p109
      %p112 = scmp.ne.s32.totalorder %s95, %s111
      %p113 = scmp.eq.s32.totalorder %s19, 0
      %p114 = por %p112, %p113
      %p115 = scmp.le.s32.totalorder 1, %s13
      %p116 = scmp.lt.s32.totalorder %s13, 3
      %p117 = pnand %p115, %p116
      %p118 = pneg %p117
      // Predicated region
      $region9: #{tpu_custom_call.1} parent=5 // pred_check
        _
      $region10: #{tpu_custom_call.1} parent=5 // pred_check_branch
        %120 = sbr.rel (%p117) target = $region12
      $region11: #{tpu_custom_call.1} parent=5 // pred_region
        %s121 = ssub.s32 %s13, 1
        // Predicated region
        $region13: #{tpu_custom_call.1} parent=11 // pred_check
          %p122 = pneg %p60
        $region14: #{tpu_custom_call.1} parent=11 // pred_check_branch
          %124 = sbr.rel (%p122) target = $region16
        $region15: #{tpu_custom_call.1} parent=11 // pred_region
          %s126 = ssub.s32 128, 128
          %127 = vsyncadd [#allocation4], %s126
          %s128 = sshll.u32 [#allocation3], 4
          %s129 = int_to_ptr.vmem [resolvable:$true] %s128
          %134 = dma.hbm_to_vmem [thread:$0]  %s1, 128, %s129, [#allocation4], 64, 64, 4
        $region16: #{tpu_custom_call.1} parent=11 // pred_fallthru
          _
        // Predicated region
        $region17: #{tpu_custom_call.1} parent=11 // pred_check
          %p135 = pneg %p81
        $region18: #{tpu_custom_call.1} parent=11 // pred_check_branch
          %137 = sbr.rel (%p135) target = $region20
        $region19: #{tpu_custom_call.1} parent=11 // pred_region
          _
        $region20: #{tpu_custom_call.1} parent=11 // pred_fallthru
          _
      $region12: #{tpu_custom_call.1} parent=5 // pred_fallthru
        _
      %p138 = scmp.lt.s32.totalorder %s13, 2
      // Predicated region
      $region21: #{tpu_custom_call.1} parent=5 // pred_check
        %p139 = pneg %p138
      $region22: #{tpu_custom_call.1} parent=5 // pred_check_branch
        %141 = sbr.rel (%p139) target = $region24
      $region23: #{tpu_custom_call.1} parent=5 // pred_region
        // Predicated region
        $region25: #{tpu_custom_call.1} parent=23 // pred_check
          %p142 = pneg %p33
        $region26: #{tpu_custom_call.1} parent=23 // pred_check_branch
          %144 = sbr.rel (%p142) target = $region28
        $region27: #{tpu_custom_call.1} parent=23 // pred_region
          %s145 = sand.u32 %s23, 1
          %s146 = sand.u32 %s23, 1
          %s147 = smul.addr %s146, 16
          %s148 = scalar_lea.vmem [#allocation2], %s147
          %s149 = smul.u32 2, %s13
          %s150 = smul.addr %s149, 4
          %s151 = scalar_lea.vmem %s0, %s150
          // Predicated region
          $region29: #{tpu_custom_call.1} parent=27 // pred_check
            _
          $region30: #{tpu_custom_call.1} parent=27 // pred_check_branch
            %153 = sbr.rel (0) target = $region32
          $region31: #{tpu_custom_call.1} parent=27 // pred_region
            // Predicated region
            $region33: #{tpu_custom_call.1} parent=31 // pred_check
              _
            $region34: #{tpu_custom_call.1} parent=31 // pred_check_branch
              %155 = sbr.rel (0) target = $region36
            $region35: #{tpu_custom_call.1} parent=31 // pred_region
              // Predicated region
              $region48: #{tpu_custom_call.1} parent=35 // pred_check
                _
              $region49: #{tpu_custom_call.1} parent=35 // pred_check_branch
                %172 = sbr.rel (0) target = $region51
              $region50: #{tpu_custom_call.1} parent=35 // pred_region
                loop: start=0, step=1, limit=1
                $region52: #{tpu_custom_call.1} parent=50 // loop_pre_header
                  _
                $region53: #{tpu_custom_call.1} parent=50 // loop_header
                  %s174 = sphi 0, %s178
                  %p175 = scmp.ge.s32.totalorder %s174, 1
                  %s179 = sphi %s151, %s151
                  %s180 = sphi %s148, %s148
                $region54: #{tpu_custom_call.1} parent=50 // loop_header_branch
                  %177 = sbr.rel (%p175) target = $region58
                $region55: #{tpu_custom_call.1} parent=50 // loop_body
                  %v181 = vld [vmem:[%s179] sm:$0xff]
                  %182 = vst [vmem:[%s180] sm:$0xff] %v181
                  %v183 = vld [vmem:[%s179 + $0x10] sm:$0xff]
                  %184 = vst [vmem:[%s180 + $0x8] sm:$0xff] %v183
                $region56: #{tpu_custom_call.1} parent=50 // loop_footer
                  %s178 = sadd.s32 1, %s174
                $region57: #{tpu_custom_call.1} parent=50 // loop_footer_branch
                  %173 = sbr.rel target = $region53
                $region58: #{tpu_custom_call.1} parent=50 // loop_exit
                  _
              $region51: #{tpu_custom_call.1} parent=35 // pred_fallthru
                _
              // Predicated region
              $region59: #{tpu_custom_call.1} parent=35 // pred_check
                _
              $region60: #{tpu_custom_call.1} parent=35 // pred_check_branch
                %186 = sbr.rel target = $region62
              $region61: #{tpu_custom_call.1} parent=35 // pred_region
                _
              $region62: #{tpu_custom_call.1} parent=35 // pred_fallthru
                _
            $region36: #{tpu_custom_call.1} parent=31 // pred_fallthru
              _
            // Predicated region
            $region37: #{tpu_custom_call.1} parent=31 // pred_check
              _
            $region38: #{tpu_custom_call.1} parent=31 // pred_check_branch
              %157 = sbr.rel target = $region40
            $region39: #{tpu_custom_call.1} parent=31 // pred_region
              loop: start=0, step=1, limit=1
              $region41: #{tpu_custom_call.1} parent=39 // loop_pre_header
                _
              $region42: #{tpu_custom_call.1} parent=39 // loop_header
                %s160 = sphi 0, %s164
                %p161 = scmp.ge.s32.totalorder %s160, 1
                %s165 = sphi %s151, %s151
                %s166 = sphi %s148, %s148
              $region43: #{tpu_custom_call.1} parent=39 // loop_header_branch
                %163 = sbr.rel (%p161) target = $region47
              $region44: #{tpu_custom_call.1} parent=39 // loop_body
                %v167 = vld [vmem:[%s165] sm:$0xff]
                %168 = vst [vmem:[%s166] sm:$0xff] %v167
                %v169 = vld [vmem:[%s165 + $0x10] sm:$0xff]
                %170 = vst [vmem:[%s166 + $0x8] sm:$0xff] %v169
              $region45: #{tpu_custom_call.1} parent=39 // loop_footer
                %s164 = sadd.s32 1, %s160
              $region46: #{tpu_custom_call.1} parent=39 // loop_footer_branch
                %159 = sbr.rel target = $region42
              $region47: #{tpu_custom_call.1} parent=39 // loop_exit
                _
            $region40: #{tpu_custom_call.1} parent=31 // pred_fallthru
              _
          $region32: #{tpu_custom_call.1} parent=27 // pred_fallthru
            _
          %187 = vnop
        $region28: #{tpu_custom_call.1} parent=23 // pred_fallthru
          _
      $region24: #{tpu_custom_call.1} parent=5 // pred_fallthru
        _
      %p188 = scmp.le.s32.totalorder 1, %s13
      %p189 = scmp.lt.s32.totalorder %s13, 3
      %p190 = pnand %p188, %p189
      %p191 = pneg %p190
      // Predicated region
      $region63: #{tpu_custom_call.1} parent=5 // pred_check
        _
      $region64: #{tpu_custom_call.1} parent=5 // pred_check_branch
        %193 = sbr.rel (%p190) target = $region66
      $region65: #{tpu_custom_call.1} parent=5 // pred_region
        %s194 = ssub.s32 %s13, 1
        %s195 = sand.u32 %s26, 1
        %s196 = sand.u32 %s26, 1
        %s197 = smul.addr %s196, 16
        %s198 = scalar_lea.vmem [#allocation2], %s197
        // Predicated region
        $region67: #{tpu_custom_call.1} parent=65 // pred_check
          %p199 = pneg %p39
        $region68: #{tpu_custom_call.1} parent=65 // pred_check_branch
          %201 = sbr.rel (%p199) target = $region70
        $region69: #{tpu_custom_call.1} parent=65 // pred_region
          _
        $region70: #{tpu_custom_call.1} parent=65 // pred_fallthru
          _
        // Predicated region
        $region71: #{tpu_custom_call.1} parent=65 // pred_check
          %p202 = pneg %p60
        $region72: #{tpu_custom_call.1} parent=65 // pred_check_branch
          %204 = sbr.rel (%p202) target = $region74
        $region73: #{tpu_custom_call.1} parent=65 // pred_region
          %205 = dma.done [#allocation4], 128
        $region74: #{tpu_custom_call.1} parent=65 // pred_fallthru
          _
        %s206 = sand.u32 %s26, 1
        %s207 = sand.u32 %s26, 1
        %s208 = smul.addr %s207, 16
        %s209 = scalar_lea.vmem [#allocation2], %s208
        %p210 = pneg %p39
        %p211 = pneg %p36
        %p212 = pneg %p60
        %p213 = pneg %p57
        %p214 = pneg %p81
        %p215 = pneg %p78
        %p216 = pneg %p107
        %p217 = pneg %p104
        %s218 = sand.u32 %s94, 1
        %s219 = scalar_lea.sflag [#allocation5], %s218
        %s220 = sand.u32 %s94, 1
        %s221 = smul.addr %s220, 64
        %s222 = scalar_lea.vmem [#allocation6], %s221
        %s223 = smul.u32 2, %s18
        %s224 = smul.u32 2, %s18
        %v226 = vld [vmem:[#allocation3] sm:$0xf]
        %v227 = vld [vmem:[#allocation3 + $0x4] sm:$0xf]
        %v228 = vld [vmem:[%s198] sm:$0xff]
        %v229 = vld [vmem:[%s198 + $0x8] sm:$0xff]
        %v230 = vld [vmem:[%s2] sm:$0xff]
        %v231 = vld [vmem:[%s2 + $0x8] sm:$0xff]
        %v232 = vld [vmem:[%s2 + $0x10] sm:$0xff]
        %v233 = vld [vmem:[%s2 + $0x18] sm:$0xff]
        %235 = vset.pattern.permute.xlu0 0
        %236 = vperm.xlu0 %235, %v230
        %v237 = vpop.permute.xlu0 %236
        %240 = vset.pattern.permute.xlu0 0
        %241 = vperm.xlu0 %240, %v231
        %v242 = vpop.permute.xlu0 %241
        %245 = vset.pattern.permute.xlu0 0
        %246 = vperm.xlu0 %245, %v232
        %v247 = vpop.permute.xlu0 %246
        %250 = vset.pattern.permute.xlu0 0
        %251 = vperm.xlu0 %250, %v233
        %v252 = vpop.permute.xlu0 %251
        %v256 = vunpack.c.l.b16 %v226
        %v257 = vunpack.c.l.b16 %v227
        %v258 = vpack.c.b16 %v257, %v256
        %260 = vxpose.xlu0.c.b16.start [1/8] %v258, 128
        %261 = vxpose.xlu0.c.b16.cont [2/8] 0, 128
        %262 = vxpose.xlu0.c.b16.cont [3/8] 0, 128
        %263 = vxpose.xlu0.c.b16.cont [4/8] 0, 128
        %264 = vxpose.xlu0.c.b16.cont [5/8] 0, 128
        %265 = vxpose.xlu0.c.b16.cont [6/8] 0, 128
        %266 = vxpose.xlu0.c.b16.cont [7/8] 0, 128
        %267 = vxpose.xlu0.c.b16.end [8/8] 0, 128
        %v268 = vpop.trf.xlu0
        %v269 = vpop.trf.xlu0
        %v270 = vpop.trf.xlu0
        %v271 = vpop.trf.xlu0
        %v272 = vpop.trf.xlu0
        %v273 = vpop.trf.xlu0
        %v274 = vpop.trf.xlu0
        %v275 = vpop.trf.xlu0
        %v278 = vunpack.c.l.b16 %v228
        %v279 = vunpack.c.h.b16 %v228
        %v280 = vunpack.c.l.b16 %v229
        %v281 = vunpack.c.h.b16 %v229
        %v282 = vpack.c.b16 %v280, %v278
        %v283 = vpack.c.b16 %v281, %v279
        %vm286 = vcmask 130048
        %v288 = vsel %vm286, %v268, 0
        %v291 = vsel %vm286, %v269, 0
        %293 = vmatprep.subr.bf16.mxu0 %v283
        %294 = vmatpush1.bf16.msra.mxu0 %v282
        %295 = vmatprep.subr.bf16.mxu0 0
        %296 = vmatpush1.bf16.msra.mxu0 0
        %297 = vmatprep.subr.bf16.mxu0 0
        %298 = vmatpush1.bf16.msra.mxu0 0
        %299 = vmatprep.subr.bf16.mxu0 0
        %300 = vmatpush1.bf16.msra.mxu0 0
        %301 = vmatprep.subr.bf16.mxu0 0
        %302 = vmatpush1.bf16.msra.mxu0 0
        %303 = vmatprep.subr.bf16.mxu0 0
        %304 = vmatpush1.bf16.msra.mxu0 0
        %305 = vmatprep.subr.bf16.mxu0 0
        %306 = vmatpush1.bf16.msra.mxu0 0
        %307 = vmatprep.subr.bf16.mxu0 0
        %308 = vmatpush1.bf16.msra.mxu0 0
        %309 = vmatprep.subr.bf16.mxu0 0
        %310 = vmatpush1.bf16.msra.mxu0 0
        %311 = vmatprep.subr.bf16.mxu0 0
        %312 = vmatpush1.bf16.msra.mxu0 0
        %313 = vmatprep.subr.bf16.mxu0 0
        %314 = vmatpush1.bf16.msra.mxu0 0
        %315 = vmatprep.subr.bf16.mxu0 0
        %316 = vmatpush1.bf16.msra.mxu0 0
        %317 = vmatprep.subr.bf16.mxu0 0
        %318 = vmatpush1.bf16.msra.mxu0 0
        %319 = vmatprep.subr.bf16.mxu0 0
        %320 = vmatpush1.bf16.msra.mxu0 0
        %321 = vmatprep.subr.bf16.mxu0 0
        %322 = vmatpush1.bf16.msra.mxu0 0
        %323 = vmatprep.subr.bf16.mxu0 0
        %324 = vmatpush1.bf16.msra.mxu0 0
        %325 = vmatprep.mubr.bf16.mxu0 0
        %326 = vmatmul.mubr.bf16.gmra.mrb[0].mxu0 %v288
        %v327 = vpop.f32.mrb[0].mxu0
        %v328 = vadd.f32 %v237, %v327
        %v329 = vpop.f32.mrb[0].mxu0
        %v330 = vadd.f32 %v237, %v329
        %v331 = vpop.f32.mrb[0].mxu0
        %v332 = vadd.f32 %v242, %v331
        %v333 = vpop.f32.mrb[0].mxu0
        %v334 = vadd.f32 %v242, %v333
        %335 = vmatprep.mubr.bf16.mxu0 0
        %336 = vmatmul.mubr.bf16.gmra.mrb[0].mxu0 %v291
        %v337 = vpop.f32.mrb[0].mxu0
        %v338 = vadd.f32 %v247, %v337
        %v339 = vpop.f32.mrb[0].mxu0
        %v340 = vadd.f32 %v247, %v339
        %v341 = vpop.f32.mrb[0].mxu0
        %v342 = vadd.f32 %v252, %v341
        %v343 = vpop.f32.mrb[0].mxu0
        %v344 = vadd.f32 %v252, %v343
        %345 = vdwg.mxu0
        %346 = vst [vmem:[%s222] sm:$0xff] %v328
        %347 = vst [vmem:[%s222 + $0x8] sm:$0xff] %v330
        %348 = vst [vmem:[%s222 + $0x10] sm:$0xff] %v332
        %349 = vst [vmem:[%s222 + $0x18] sm:$0xff] %v334
        %350 = vst [vmem:[%s222 + $0x20] sm:$0xff] %v338
        %351 = vst [vmem:[%s222 + $0x28] sm:$0xff] %v340
        %352 = vst [vmem:[%s222 + $0x30] sm:$0xff] %v342
        %353 = vst [vmem:[%s222 + $0x38] sm:$0xff] %v344
        %s354 = sand.u32 %s94, 1
        %s355 = scalar_lea.sflag [#allocation5], %s354
        %s356 = sand.u32 %s94, 1
        %s357 = smul.addr %s356, 64
        %s358 = scalar_lea.vmem [#allocation6], %s357
        // Predicated region
        $region75: #{tpu_custom_call.1} parent=65 // pred_check
          %p359 = pneg %p104
        $region76: #{tpu_custom_call.1} parent=65 // pred_check_branch
          %361 = sbr.rel (%p359) target = $region78
        $region77: #{tpu_custom_call.1} parent=65 // pred_region
          %s362 = smul.u32 2, %s18
          %s364 = ssub.s32 1024, 1024
          %365 = vsyncadd %s355, %s364
          %s366 = smul.addr %s362, 128
          %s367 = scalar_lea.hbm %s3, %s366
          %s368 = sshll.u32 %s358, 4
          %s369 = int_to_ptr.vmem [resolvable:$true] %s368
          %374 = dma.vmem_to_hbm [thread:$0]  %s369, 1024, %s367, %s355, 256, 512, 16
        $region78: #{tpu_custom_call.1} parent=65 // pred_fallthru
          _
      $region66: #{tpu_custom_call.1} parent=5 // pred_fallthru
        _
      %p375 = scmp.le.s32.totalorder 2, %s13
      // Predicated region
      $region79: #{tpu_custom_call.1} parent=5 // pred_check
        %p376 = pneg %p375
      $region80: #{tpu_custom_call.1} parent=5 // pred_check_branch
        %378 = sbr.rel (%p376) target = $region82
      $region81: #{tpu_custom_call.1} parent=5 // pred_region
        %s379 = ssub.s32 %s13, 2
        // Predicated region
        $region83: #{tpu_custom_call.1} parent=81 // pred_check
          %p380 = pneg %p110
        $region84: #{tpu_custom_call.1} parent=81 // pred_check_branch
          %382 = sbr.rel (%p380) target = $region86
        $region85: #{tpu_custom_call.1} parent=81 // pred_region
          %s383 = sand.u32 %s95, 1
          %s384 = scalar_lea.sflag [#allocation5], %s383
          %s385 = sand.u32 %s95, 1
          %s386 = smul.addr %s385, 64
          %s387 = scalar_lea.vmem [#allocation6], %s386
          %388 = dma.done %s384, 1024
        $region86: #{tpu_custom_call.1} parent=81 // pred_fallthru
          _
      $region82: #{tpu_custom_call.1} parent=5 // pred_fallthru
        _
    $region6: #{tpu_custom_call.1} parent=1 // loop_footer
      %s17 = sadd.s32 1, %s13
    $region7: #{tpu_custom_call.1} parent=1 // loop_footer_branch
      %12 = sbr.rel target = $region3
    $region8: #{tpu_custom_call.1} parent=1 // loop_exit
      _
    %389 = vsyncpa [#allocation4], 1
    %s390 = scalar_lea.sflag [#allocation4], 1
    %391 = vsyncpa %s390, 1
    %392 = vsyncpa [#allocation5], 1
    %s393 = scalar_lea.sflag [#allocation5], 1
    %394 = vsyncpa %s393, 1

</llo_original>
